<compile_context>
chip_gen: v7x
topology: tpu7x:2x2x1
jax: 0.10.0
libtpu: 0.0.40
codegen_flags: <defaults>
</compile_context>

<pallas_src>
import jax
import jax.numpy as jnp
from jax.experimental import pallas as pl
from jax.experimental.pallas import tpu as pltpu


def _bilinear_matrix(in_size: int, out_size: int):
    """Interpolation matrix A (out_size, in_size) for bilinear, align_corners=True
    (nn.UpsamplingBilinear2d semantics)."""
    rows = []
    for u in range(out_size):
        row = [0.0] * in_size
        if out_size == 1 or in_size == 1:
            src = 0.0
        else:
            src = u * (in_size - 1) / (out_size - 1)
        lo = min(int(src), in_size - 1)
        hi = min(lo + 1, in_size - 1)
        frac = src - lo
        row[lo] += 1.0 - frac
        row[hi] += frac
        rows.append(row)
    return jnp.array(rows, dtype=jnp.float32)


def _upsample_matrix_t(h, w, h_out, w_out):
    """Transposed 2-D bilinear upsampling matrix, shape (H*W, H_out*W_out).

    Mt[h*W + w, u*W_out + v] = A_h[u, h] * A_w[v, w]  (Kronecker product A_h (x) A_w)^T
    """
    ah = _bilinear_matrix(h, h_out)   # (H_out, H)
    aw = _bilinear_matrix(w, w_out)   # (W_out, W)
    return jnp.einsum("uh,vw->hwuv", ah, aw).reshape(h * w, h_out * w_out)


def _decoder_stage_kernel(x_ref, w_ref, mt_ref, b_ref, o_ref):
    # x_ref:  (1, 1, C_in,  HW)       one (stage, batch) element
    # w_ref:  (1, C_out, C_in)        1x1 conv weight for this stage
    # mt_ref: (1, HW, HWout)          transposed upsampling matrix for this stage
    # b_ref:  (1, C_out, 1)           conv bias
    # o_ref:  (1, 1, C_out, HWout)    lane-dense output (last dim = H_out*W_out)
    x = x_ref[0, 0, :, :]                                              # (C_in, HW)
    w = w_ref[0, :, :]                                                 # (C_out, C_in)
    mt = mt_ref[0, :, :]                                               # (HW, HWout)
    y = jnp.dot(w, x, preferred_element_type=jnp.float32)              # (C_out, HW)
    out = jnp.dot(y, mt, preferred_element_type=jnp.float32)           # (C_out, HWout)
    o_ref[0, 0, :, :] = out + b_ref[0, :, :]


def _decoder_stages_fused(features, params, scale_factors):
    """Run a group of decoder stages (same batch and same output H_out, W_out)
    in a single pallas_call with grid = (num_stages, batch)."""
    n = features[0].shape[0]
    c_out = params[0][0].shape[0]
    h_out = features[0].shape[2] * scale_factors[0]
    w_out = features[0].shape[3] * scale_factors[0]
    hw_out = h_out * w_out
    n_stages = len(features)

    c_in_max = max(f.shape[1] for f in features)
    hw_max = max(f.shape[2] * f.shape[3] for f in features)

    xs, ws, mts, bs = [], [], [], []
    for feat, (weight, bias), sf in zip(features, params, scale_factors):
        _, c_in, h, w = feat.shape
        hw = h * w
        # Zero-pad channels / spatial so all stages share one block shape; the
        # padded weight columns and padded Mt rows are zero, so padding never
        # contributes to the result.
        x2 = jnp.pad(feat.reshape(n, c_in, hw).astype(jnp.float32),
                     ((0, 0), (0, c_in_max - c_in), (0, hw_max - hw)))
        wp = jnp.pad(weight.astype(jnp.float32), ((0, 0), (0, c_in_max - c_in)))
        mt = jnp.pad(_upsample_matrix_t(h, w, h * sf, w * sf),
                     ((0, hw_max - hw), (0, 0)))
        xs.append(x2)
        ws.append(wp)
        mts.append(mt)
        bs.append(bias.astype(jnp.float32).reshape(c_out, 1))

    x_all = jnp.stack(xs)    # (S, N, C_in_max, HW_max)
    w_all = jnp.stack(ws)    # (S, C_out, C_in_max)
    mt_all = jnp.stack(mts)  # (S, HW_max, HWout)
    b_all = jnp.stack(bs)    # (S, C_out, 1)

    out = pl.pallas_call(
        _decoder_stage_kernel,
        out_shape=jax.ShapeDtypeStruct((n_stages, n, c_out, hw_out), jnp.float32),
        grid=(n_stages, n),
        in_specs=[
            pl.BlockSpec((1, 1, c_in_max, hw_max), lambda si, ni: (si, ni, 0, 0)),
            pl.BlockSpec((1, c_out, c_in_max), lambda si, ni: (si, 0, 0)),
            pl.BlockSpec((1, hw_max, hw_out), lambda si, ni: (si, 0, 0)),
            pl.BlockSpec((1, c_out, 1), lambda si, ni: (si, 0, 0)),
        ],
        out_specs=pl.BlockSpec((1, 1, c_out, hw_out), lambda si, ni: (si, ni, 0, 0)),
        compiler_params=pltpu.CompilerParams(
            dimension_semantics=("parallel", "parallel"),
        ),
    )(x_all, w_all, mt_all, b_all)

    results = []
    for i, (feat, sf) in enumerate(zip(features, scale_factors)):
        h, w = feat.shape[2], feat.shape[3]
        results.append(out[i].reshape(n, c_out, h * sf, w * sf))
    return results


def segformer_decoder_forward(features, params, scale_factors):
    """SegFormerDecoder.forward: per-stage (upsample + 1x1 conv); returns a list."""
    out_sizes = {(f.shape[2] * sf, f.shape[3] * sf)
                 for f, sf in zip(features, scale_factors)}
    batches = {f.shape[0] for f in features}
    if len(out_sizes) == 1 and len(batches) == 1:
        # Common SegFormer case: all stages decode to the same resolution ->
        # fuse everything into one pallas_call.
        return _decoder_stages_fused(features, params, scale_factors)
    # General fallback: one pallas_call per stage (same efficient kernel).
    return [
        _decoder_stages_fused([f], [p], [sf])[0]
        for f, p, sf in zip(features, params, scale_factors)
    ]


if __name__ == "__main__":
    key = jax.random.PRNGKey(0)

    batch = 2
    out_channels = 16
    widths = [8, 16, 32]          # per-stage input channels
    spatials = [16, 8, 4]         # per-stage H = W
    scale_factors = [2, 4, 8]     # all stages upsample to 32x32

    keys = jax.random.split(key, 3 * len(widths))
    features, params = [], []
    ki = 0
    for c_in, s in zip(widths, spatials):
        features.append(
            jax.random.normal(keys[ki], (batch, c_in, s, s), dtype=jnp.float32))
        ki += 1
    for c_in in widths:
        weight = 0.05 * jax.random.normal(keys[ki], (out_channels, c_in),
                                          dtype=jnp.float32)
        bias = 0.05 * jax.random.normal(keys[ki + 1], (out_channels,),
                                        dtype=jnp.float32)
        params.append((weight, bias))
        ki += 2

    outs = segformer_decoder_forward(features, params, scale_factors)
    outs = jax.block_until_ready(outs)

    # Lightweight correctness check against a pure-JAX reference of the same math.
    for feat, (weight, bias), sf, out in zip(features, params, scale_factors, outs):
        h, w = feat.shape[2], feat.shape[3]
        ah = _bilinear_matrix(h, h * sf)
        aw = _bilinear_matrix(w, w * sf)
        up = jnp.einsum("uh,nchw,vw->ncuv", ah, feat, aw)
        ref = jnp.einsum("kc,ncuv->nkuv", weight, up) + bias[None, :, None, None]
        assert out.shape == ref.shape, (out.shape, ref.shape)
        max_err = float(jnp.abs(out - ref).max())
        assert jnp.allclose(out, ref, atol=1e-3, rtol=1e-3), max_err

    print("KERNEL_OK")
</pallas_src>

<mosaic_0001>
module attributes {stable_mosaic.version = 11 : i64} {
  func.func @_decoder_stage_kernel(%arg0: i32, %arg1: i32, %arg2: memref<1x1x32x256xf32, #tpu.memory_space<vmem>>, %arg3: memref<1x16x32xf32, #tpu.memory_space<vmem>>, %arg4: memref<1x256x1024xf32, #tpu.memory_space<vmem>>, %arg5: memref<1x16x1xf32, #tpu.memory_space<vmem>>, %arg6: memref<1x1x16x1024xf32, #tpu.memory_space<vmem>>) attributes {dimension_semantics = [#tpu.dimension_semantics<parallel>, #tpu.dimension_semantics<parallel>], iteration_bounds = array<i64: 3, 2>, scalar_prefetch = 0 : i64, scratch_operands = 0 : i64, tpu.core_type = #tpu.core_type<tc>, window_params = [{transform_indices = @transform_0, window_bounds = array<i64: 1, 1, 32, 256>}, {transform_indices = @transform_1, window_bounds = array<i64: 1, 16, 32>}, {transform_indices = @transform_2, window_bounds = array<i64: 1, 256, 1024>}, {transform_indices = @transform_3, window_bounds = array<i64: 1, 16, 1>}, {transform_indices = @transform_4, window_bounds = array<i64: 1, 1, 16, 1024>}]} {
    %c0 = arith.constant 0 : index
    %c0_0 = arith.constant 0 : index
    %c0_1 = arith.constant 0 : index
    %c0_2 = arith.constant 0 : index
    %0 = vector.load %arg2[%c0, %c0_0, %c0_1, %c0_2] : memref<1x1x32x256xf32, #tpu.memory_space<vmem>>, vector<1x1x32x256xf32>
    %1 = vector.shape_cast %0 : vector<1x1x32x256xf32> to vector<32x256xf32>
    %c0_3 = arith.constant 0 : index
    %c0_4 = arith.constant 0 : index
    %c0_5 = arith.constant 0 : index
    %2 = vector.load %arg3[%c0_3, %c0_4, %c0_5] : memref<1x16x32xf32, #tpu.memory_space<vmem>>, vector<1x16x32xf32>
    %3 = vector.shape_cast %2 : vector<1x16x32xf32> to vector<16x32xf32>
    %c0_6 = arith.constant 0 : index
    %c0_7 = arith.constant 0 : index
    %c0_8 = arith.constant 0 : index
    %4 = vector.load %arg4[%c0_6, %c0_7, %c0_8] : memref<1x256x1024xf32, #tpu.memory_space<vmem>>, vector<1x256x1024xf32>
    %5 = vector.shape_cast %4 : vector<1x256x1024xf32> to vector<256x1024xf32>
    %cst = arith.constant dense<0.000000e+00> : vector<16x256xf32>
    %6 = tpu.matmul %3, %1, %cst {dimension_numbers = #tpu.dot_dimension_numbers<[1], [0], [0], [1], [0, 0, 1, 1], [], []>} : vector<16x32xf32>, vector<32x256xf32>, vector<16x256xf32> -> vector<16x256xf32>
    %cst_9 = arith.constant dense<0.000000e+00> : vector<16x1024xf32>
    %7 = tpu.matmul %6, %5, %cst_9 {dimension_numbers = #tpu.dot_dimension_numbers<[1], [0], [0], [1], [0, 0, 1, 1], [], []>} : vector<16x256xf32>, vector<256x1024xf32>, vector<16x1024xf32> -> vector<16x1024xf32>
    %c0_10 = arith.constant 0 : index
    %c0_11 = arith.constant 0 : index
    %c0_12 = arith.constant 0 : index
    %8 = vector.load %arg5[%c0_10, %c0_11, %c0_12] : memref<1x16x1xf32, #tpu.memory_space<vmem>>, vector<1x16x1xf32>
    %9 = vector.shape_cast %8 : vector<1x16x1xf32> to vector<16x1xf32>
    %10 = vector.broadcast %9 : vector<16x1xf32> to vector<16x1024xf32>
    %11 = arith.addf %7, %10 : vector<16x1024xf32>
    %c0_13 = arith.constant 0 : index
    %c0_14 = arith.constant 0 : index
    %c0_15 = arith.constant 0 : index
    %c0_16 = arith.constant 0 : index
    %12 = vector.load %arg6[%c0_13, %c0_14, %c0_15, %c0_16] : memref<1x1x16x1024xf32, #tpu.memory_space<vmem>>, vector<1x1x16x1024xf32>
    %13 = vector.shape_cast %12 : vector<1x1x16x1024xf32> to vector<16x1024xf32>
    %14 = vector.shape_cast %11 : vector<16x1024xf32> to vector<1x1x16x1024xf32>
    tpu.vector_store %arg6[%c0_13, %c0_14, %c0_15, %c0_16], %14 {strides = array<i32>} : memref<1x1x16x1024xf32, #tpu.memory_space<vmem>>, vector<1x1x16x1024xf32>,
    return
  }
  func.func @transform_0(%arg0: i32, %arg1: i32) -> (i32, i32, i32, i32) {
    %c0_i32 = arith.constant 0 : i32
    %c0_i32_0 = arith.constant 0 : i32
    %c0_i32_1 = arith.constant 0 : i32
    return %arg0, %arg1, %c0_i32, %c0_i32_0 : i32, i32, i32, i32
  }
  func.func @transform_1(%arg0: i32, %arg1: i32) -> (i32, i32, i32) {
    %c0_i32 = arith.constant 0 : i32
    %c0_i32_0 = arith.constant 0 : i32
    %c0_i32_1 = arith.constant 0 : i32
    return %arg0, %c0_i32, %c0_i32_0 : i32, i32, i32
  }
  func.func @transform_2(%arg0: i32, %arg1: i32) -> (i32, i32, i32) {
    %c0_i32 = arith.constant 0 : i32
    %c0_i32_0 = arith.constant 0 : i32
    %c0_i32_1 = arith.constant 0 : i32
    return %arg0, %c0_i32, %c0_i32_0 : i32, i32, i32
  }
  func.func @transform_3(%arg0: i32, %arg1: i32) -> (i32, i32, i32) {
    %c0_i32 = arith.constant 0 : i32
    %c0_i32_0 = arith.constant 0 : i32
    %c0_i32_1 = arith.constant 0 : i32
    return %arg0, %c0_i32, %c0_i32_0 : i32, i32, i32
  }
  func.func @transform_4(%arg0: i32, %arg1: i32) -> (i32, i32, i32, i32) {
    %c0_i32 = arith.constant 0 : i32
    %c0_i32_0 = arith.constant 0 : i32
    %c0_i32_1 = arith.constant 0 : i32
    return %arg0, %arg1, %c0_i32, %c0_i32_0 : i32, i32, i32, i32
  }
}

</mosaic_0001>

<llo_original>
// kernel: tpu_custom_call.1
$region0: #{tpu_custom_call.1}
  #allocation0 [shape = 'u32[]', space=smem, size = 0x4, offset = 0x4, fixed_abs, tag = 'smem constant byte address 0x4 - core index']
  #allocation1 [shape = 'u32[144,128]{1,0:T(1,128)}', space=vmem, size = 0x12000, scoped, tag = 'internal scratch']
  %s0 = inlined_call_operand.hbm [shape: f32[3,2,32,256], index: 0, kind: input, shape index: {}]
  %s1 = inlined_call_operand.hbm [shape: f32[3,16,32], index: 1, kind: input, shape index: {}]
  %s2 = inlined_call_operand.hbm [shape: f32[3,256,1024], index: 2, kind: input, shape index: {}]
  %s3 = inlined_call_operand.vmem [shape: f32[3,16,1], index: 3, kind: input, shape index: {}]
  %s4 = inlined_call_operand.hbm [shape: f32[3,2,16,1024], index: 4, kind: output, shape index: {}]
  %s5 = sld [smem:[#allocation0]]
  $region61: #{tpu_custom_call.1} parent=0
    _
  %s7 = ssub.s32 1, %s5
  %s8 = scalar_select 0, %s7, %s5
  $region1: #{tpu_custom_call.1} parent=0
    #allocation2 [shape = 'u8[65536]{0}', space=vmem, size = 0x10000, scoped, tag = 'input window, operand 0']
    #allocation3 [shape = 's32[2]{0}', space=sflag, size = 0x8, scoped, tag = 'scoped memory for tpu_custom_call.1']
    #allocation4 [shape = 's32[2]{0}', space=sflag, size = 0x8, scoped, tag = 'scoped memory for tpu_custom_call.1']
    #allocation5 [shape = 'u8[16384]{0}', space=vmem, size = 0x4000, scoped, tag = 'input window, operand 1']
    #allocation6 [shape = 's32[2]{0}', space=sflag, size = 0x8, scoped, tag = 'scoped memory for tpu_custom_call.1']
    #allocation7 [shape = 'u8[2097152]{0}', space=vmem, size = 0x200000, scoped, tag = 'input window, operand 2']
    #allocation8 [shape = 'u8[131072]{0}', space=vmem, size = 0x20000, scoped, tag = 'output window, operand 0']
    %9 = vsyncpa [#allocation3], 0
    %s10 = scalar_lea.sflag [#allocation3], 1
    %11 = vsyncpa %s10, 0
    %12 = vsyncpa [#allocation6], 0
    %s13 = scalar_lea.sflag [#allocation6], 1
    %14 = vsyncpa %s13, 0
    %15 = vsyncpa [#allocation4], 0
    %s16 = scalar_lea.sflag [#allocation4], 1
    %17 = vsyncpa %s16, 0
    loop: start=0, step=1, limit=8
    $region2: #{tpu_custom_call.1} parent=1 // loop_pre_header
      _
    $region3: #{tpu_custom_call.1} parent=1 // loop_header
      %s19 = sphi 0, %s23
      %p20 = scmp.ge.s32.totalorder %s19, 8
      %s26 = sphi 0, %s38
      %s27 = sphi 0, %s34
      %s28 = sphi 0, %s26
      %s29 = sphi 0, %s27
      %s30 = sphi 0, %s28
      %s31 = sphi 0, %s29
      %s43 = sphi 0, %s45
      %s46 = sphi 0, %s43
      %s47 = sphi 0, %s46
      %s63 = sphi 0, %s47
      %s69 = sphi 0, %s71
      %s72 = sphi 0, %s69
      %s73 = sphi 0, %s72
      %s89 = sphi 0, %s73
      %s95 = sphi 0, %s97
      %s98 = sphi 0, %s95
      %s99 = sphi 0, %s98
      %s115 = sphi 0, %s99
      %s121 = sphi 0, %s123
      %s124 = sphi 0, %s121
      %s125 = sphi 0, %s124
      %s141 = sphi 0, %s125
      %s149 = sphi 0, %s151
      %s152 = sphi 0, %s149
      %s153 = sphi 0, %s152
      %s169 = sphi 0, %s153
    $region4: #{tpu_custom_call.1} parent=1 // loop_header_branch
      %22 = sbr.rel (%p20) target = $region8
    $region5: #{tpu_custom_call.1} parent=1 // loop_body
      %s24 = ssub.s32 %s19, 1
      %s25 = ssub.s32 %s19, 2
      %s32 = sadd.s32 1, %s27
      %p33 = scmp.ge.s32.totalorder %s32, 2
      %s34 = scalar_select %p33, 0, %s32
      %s35 = sadd.s32 1, %s26
      %s36 = scalar_select %p33, %s35, %s26
      %p37 = scmp.ge.s32.totalorder %s36, 3
      %s38 = scalar_select %p37, 0, %s36
      %s39 = ssub.s32 %s26, %s38
      %s40 = ssub.s32 %s27, %s34
      %s41 = sor.u32 %s39, %s40
      %p42 = scmp.eq.s32.totalorder %s41, 0
      %s44 = sadd.s32 %s43, 1
      %s45 = scalar_select %p42, %s43, %s44
      %p48 = pneg %p42
      %p49 = scmp.eq.s32.totalorder %s19, 5
      %p50 = por %p48, %p49
      %p51 = scmp.ne.s32.totalorder %s43, %s46
      %p52 = scmp.eq.s32.totalorder %s19, 0
      %p53 = por %p51, %p52
      %p54 = scmp.ne.s32.totalorder %s43, %s46
      %p55 = scmp.eq.s32.totalorder %s24, 5
      %p56 = por %p54, %p55
      %p57 = scmp.ne.s32.totalorder %s46, %s47
      %p58 = scmp.eq.s32.totalorder %s24, 0
      %p59 = por %p57, %p58
      %p60 = scmp.ne.s32.totalorder %s46, %s47
      %p61 = scmp.eq.s32.totalorder %s25, 5
      %p62 = por %p60, %p61
      %p64 = scmp.ne.s32.totalorder %s47, %s63
      %p65 = scmp.eq.s32.totalorder %s25, 0
      %p66 = por %p64, %p65
      %s67 = ssub.s32 %s26, %s38
      %p68 = scmp.eq.s32.totalorder %s67, 0
      %s70 = sadd.s32 %s69, 1
      %s71 = scalar_select %p68, %s69, %s70
      %p74 = pneg %p68
      %p75 = scmp.eq.s32.totalorder %s19, 5
      %p76 = por %p74, %p75
      %p77 = scmp.ne.s32.totalorder %s69, %s72
      %p78 = scmp.eq.s32.totalorder %s19, 0
      %p79 = por %p77, %p78
      %p80 = scmp.ne.s32.totalorder %s69, %s72
      %p81 = scmp.eq.s32.totalorder %s24, 5
      %p82 = por %p80, %p81
      %p83 = scmp.ne.s32.totalorder %s72, %s73
      %p84 = scmp.eq.s32.totalorder %s24, 0
      %p85 = por %p83, %p84
      %p86 = scmp.ne.s32.totalorder %s72, %s73
      %p87 = scmp.eq.s32.totalorder %s25, 5
      %p88 = por %p86, %p87
      %p90 = scmp.ne.s32.totalorder %s73, %s89
      %p91 = scmp.eq.s32.totalorder %s25, 0
      %p92 = por %p90, %p91
      %s93 = ssub.s32 %s26, %s38
      %p94 = scmp.eq.s32.totalorder %s93, 0
      %s96 = sadd.s32 %s95, 1
      %s97 = scalar_select %p94, %s95, %s96
      %p100 = pneg %p94
      %p101 = scmp.eq.s32.totalorder %s19, 5
      %p102 = por %p100, %p101
      %p103 = scmp.ne.s32.totalorder %s95, %s98
      %p104 = scmp.eq.s32.totalorder %s19, 0
      %p105 = por %p103, %p104
      %p106 = scmp.ne.s32.totalorder %s95, %s98
      %p107 = scmp.eq.s32.totalorder %s24, 5
      %p108 = por %p106, %p107
      %p109 = scmp.ne.s32.totalorder %s98, %s99
      %p110 = scmp.eq.s32.totalorder %s24, 0
      %p111 = por %p109, %p110
      %p112 = scmp.ne.s32.totalorder %s98, %s99
      %p113 = scmp.eq.s32.totalorder %s25, 5
      %p114 = por %p112, %p113
      %p116 = scmp.ne.s32.totalorder %s99, %s115
      %p117 = scmp.eq.s32.totalorder %s25, 0
      %p118 = por %p116, %p117
      %s119 = ssub.s32 %s26, %s38
      %p120 = scmp.eq.s32.totalorder %s119, 0
      %s122 = sadd.s32 %s121, 1
      %s123 = scalar_select %p120, %s121, %s122
      %p126 = pneg %p120
      %p127 = scmp.eq.s32.totalorder %s19, 5
      %p128 = por %p126, %p127
      %p129 = scmp.ne.s32.totalorder %s121, %s124
      %p130 = scmp.eq.s32.totalorder %s19, 0
      %p131 = por %p129, %p130
      %p132 = scmp.ne.s32.totalorder %s121, %s124
      %p133 = scmp.eq.s32.totalorder %s24, 5
      %p134 = por %p132, %p133
      %p135 = scmp.ne.s32.totalorder %s124, %s125
      %p136 = scmp.eq.s32.totalorder %s24, 0
      %p137 = por %p135, %p136
      %p138 = scmp.ne.s32.totalorder %s124, %s125
      %p139 = scmp.eq.s32.totalorder %s25, 5
      %p140 = por %p138, %p139
      %p142 = scmp.ne.s32.totalorder %s125, %s141
      %p143 = scmp.eq.s32.totalorder %s25, 0
      %p144 = por %p142, %p143
      %s145 = ssub.s32 %s26, %s38
      %s146 = ssub.s32 %s27, %s34
      %s147 = sor.u32 %s145, %s146
      %p148 = scmp.eq.s32.totalorder %s147, 0
      %s150 = sadd.s32 %s149, 1
      %s151 = scalar_select %p148, %s149, %s150
      %p154 = pneg %p148
      %p155 = scmp.eq.s32.totalorder %s19, 5
      %p156 = por %p154, %p155
      %p157 = scmp.ne.s32.totalorder %s149, %s152
      %p158 = scmp.eq.s32.totalorder %s19, 0
      %p159 = por %p157, %p158
      %p160 = scmp.ne.s32.totalorder %s149, %s152
      %p161 = scmp.eq.s32.totalorder %s24, 5
      %p162 = por %p160, %p161
      %p163 = scmp.ne.s32.totalorder %s152, %s153
      %p164 = scmp.eq.s32.totalorder %s24, 0
      %p165 = por %p163, %p164
      %p166 = scmp.ne.s32.totalorder %s152, %s153
      %p167 = scmp.eq.s32.totalorder %s25, 5
      %p168 = por %p166, %p167
      %p170 = scmp.ne.s32.totalorder %s153, %s169
      %p171 = scmp.eq.s32.totalorder %s25, 0
      %p172 = por %p170, %p171
      %p173 = scmp.le.s32.totalorder 1, %s19
      %p174 = scmp.lt.s32.totalorder %s19, 7
      %p175 = pnand %p173, %p174
      %p176 = pneg %p175
      // Predicated region
      $region9: #{tpu_custom_call.1} parent=5 // pred_check
        _
      $region10: #{tpu_custom_call.1} parent=5 // pred_check_branch
        %178 = sbr.rel (%p175) target = $region12
      $region11: #{tpu_custom_call.1} parent=5 // pred_region
        %s179 = ssub.s32 %s19, 1
      $region12: #{tpu_custom_call.1} parent=5 // pred_fallthru
        _
      %p180 = scmp.lt.s32.totalorder %s19, 6
      // Predicated region
      $region13: #{tpu_custom_call.1} parent=5 // pred_check
        %p181 = pneg %p180
      $region14: #{tpu_custom_call.1} parent=5 // pred_check_branch
        %183 = sbr.rel (%p181) target = $region16
      $region15: #{tpu_custom_call.1} parent=5 // pred_region
        // Predicated region
        $region17: #{tpu_custom_call.1} parent=15 // pred_check
          %p184 = pneg %p53
        $region18: #{tpu_custom_call.1} parent=15 // pred_check_branch
          %186 = sbr.rel (%p184) target = $region20
        $region19: #{tpu_custom_call.1} parent=15 // pred_region
          %s187 = sand.u32 %s43, 1
          %s188 = scalar_lea.sflag [#allocation3], %s187
          %s189 = sand.u32 %s43, 1
          %s190 = smul.addr %s189, 64
          %s191 = scalar_lea.vmem [#allocation2], %s190
          %s193 = ssub.s32 1024, 1024
          %194 = vsyncadd %s188, %s193
          %s195 = smul.addr %s27, 8
          %s196 = smul.addr %s26, 16
          %s197 = sadd.s32 %s195, %s196
          %s198 = smul.addr %s197, 128
          %s199 = scalar_lea.hbm %s0, %s198
          %s200 = sshll.u32 %s191, 4
          %s201 = int_to_ptr.vmem [resolvable:$true] %s200
          %206 = dma.hbm_to_vmem [thread:$0]  %s199, 1024, %s201, %s188, 256, 256, 16
        $region20: #{tpu_custom_call.1} parent=15 // pred_fallthru
          _
        // Predicated region
        $region21: #{tpu_custom_call.1} parent=15 // pred_check
          %p207 = pneg %p79
        $region22: #{tpu_custom_call.1} parent=15 // pred_check_branch
          %209 = sbr.rel (%p207) target = $region24
        $region23: #{tpu_custom_call.1} parent=15 // pred_region
          %s210 = sand.u32 %s19, 1
          %s211 = scalar_lea.sflag [#allocation6], %s210
          %s212 = sand.u32 %s69, 1
          %s213 = smul.addr %s212, 16
          %s214 = scalar_lea.vmem [#allocation5], %s213
          %s216 = ssub.s32 256, 256
          %217 = vsyncadd %s211, %s216
          %s218 = smul.addr %s26, 2
          %s219 = smul.addr %s218, 128
          %s220 = scalar_lea.hbm %s1, %s219
          %s221 = sshll.u32 %s214, 4
          %s222 = int_to_ptr.vmem [resolvable:$true] %s221
          %227 = dma.hbm_to_vmem [thread:$0]  %s220, 256, %s222, %s211, 128, 128, 8
        $region24: #{tpu_custom_call.1} parent=15 // pred_fallthru
          _
        // Predicated region
        $region25: #{tpu_custom_call.1} parent=15 // pred_check
          %p228 = pneg %p105
        $region26: #{tpu_custom_call.1} parent=15 // pred_check_branch
          %230 = sbr.rel (%p228) target = $region28
        $region27: #{tpu_custom_call.1} parent=15 // pred_region
          %s231 = sand.u32 %s19, 1
          %s232 = scalar_lea.sflag [#allocation6], %s231
          %s233 = sand.u32 %s95, 1
          %s234 = smul.addr %s233, 2048
          %s235 = scalar_lea.vmem [#allocation7], %s234
          %s237 = ssub.s32 32768, 32768
          %238 = vsyncadd %s232, %s237
          %s239 = smul.addr %s26, 256
          %s240 = smul.addr %s239, 128
          %s241 = scalar_lea.hbm %s2, %s240
          %s242 = sshll.u32 %s235, 4
          %s243 = int_to_ptr.vmem [resolvable:$true] %s242
          %248 = dma.hbm_to_vmem [thread:$0]  %s241, 32768, %s243, %s232, 1024, 1024, 64
        $region28: #{tpu_custom_call.1} parent=15 // pred_fallthru
          _
        // Predicated region
        $region29: #{tpu_custom_call.1} parent=15 // pred_check
          %p249 = pneg %p131
        $region30: #{tpu_custom_call.1} parent=15 // pred_check_branch
          %251 = sbr.rel (%p249) target = $region32
        $region31: #{tpu_custom_call.1} parent=15 // pred_region
          %p252 = scmp.lt.s32.totalorder %s26, 2
          %s253 = scalar_select %p252, %s26, 2
          %s254 = smul.addr %s253, 2
          %s255 = smul.addr %s254, 8
          %s256 = scalar_lea.vmem %s3, %s255
        $region32: #{tpu_custom_call.1} parent=15 // pred_fallthru
          _
      $region16: #{tpu_custom_call.1} parent=5 // pred_fallthru
        _
      %p257 = scmp.le.s32.totalorder 1, %s19
      %p258 = scmp.lt.s32.totalorder %s19, 7
      %p259 = pnand %p257, %p258
      %p260 = pneg %p259
      // Predicated region
      $region33: #{tpu_custom_call.1} parent=5 // pred_check
        _
      $region34: #{tpu_custom_call.1} parent=5 // pred_check_branch
        %262 = sbr.rel (%p259) target = $region36
      $region35: #{tpu_custom_call.1} parent=5 // pred_region
        %s263 = ssub.s32 %s19, 1
        %s264 = sand.u32 %s46, 1
        %s265 = scalar_lea.sflag [#allocation3], %s264
        %s266 = sand.u32 %s46, 1
        %s267 = smul.addr %s266, 64
        %s268 = scalar_lea.vmem [#allocation2], %s267
        // Predicated region
        $region37: #{tpu_custom_call.1} parent=35 // pred_check
          %p269 = pneg %p59
        $region38: #{tpu_custom_call.1} parent=35 // pred_check_branch
          %271 = sbr.rel (%p269) target = $region40
        $region39: #{tpu_custom_call.1} parent=35 // pred_region
          %272 = dma.done %s265, 1024
        $region40: #{tpu_custom_call.1} parent=35 // pred_fallthru
          _
        %s273 = sand.u32 %s24, 1
        %s274 = scalar_lea.sflag [#allocation6], %s273
        %s275 = sand.u32 %s72, 1
        %s276 = smul.addr %s275, 16
        %s277 = scalar_lea.vmem [#allocation5], %s276
        // Predicated region
        $region41: #{tpu_custom_call.1} parent=35 // pred_check
          %p278 = pneg %p85
        $region42: #{tpu_custom_call.1} parent=35 // pred_check_branch
          %280 = sbr.rel (%p278) target = $region44
        $region43: #{tpu_custom_call.1} parent=35 // pred_region
          %281 = dma.done %s274, 256
        $region44: #{tpu_custom_call.1} parent=35 // pred_fallthru
          _
        %s282 = sand.u32 %s24, 1
        %s283 = scalar_lea.sflag [#allocation6], %s282
        %s284 = sand.u32 %s98, 1
        %s285 = smul.addr %s284, 2048
        %s286 = scalar_lea.vmem [#allocation7], %s285
        // Predicated region
        $region45: #{tpu_custom_call.1} parent=35 // pred_check
          %p287 = pneg %p111
        $region46: #{tpu_custom_call.1} parent=35 // pred_check_branch
          %289 = sbr.rel (%p287) target = $region48
        $region47: #{tpu_custom_call.1} parent=35 // pred_region
          %290 = dma.done %s283, 32768
        $region48: #{tpu_custom_call.1} parent=35 // pred_fallthru
          _
        %s291 = sand.u32 %s46, 1
        %s292 = scalar_lea.sflag [#allocation3], %s291
        %s293 = sand.u32 %s46, 1
        %s294 = smul.addr %s293, 64
        %s295 = scalar_lea.vmem [#allocation2], %s294
        %p296 = pneg %p59
        %p297 = pneg %p56
        %s298 = sand.u32 %s24, 1
        %s299 = scalar_lea.sflag [#allocation6], %s298
        %s300 = sand.u32 %s72, 1
        %s301 = smul.addr %s300, 16
        %s302 = scalar_lea.vmem [#allocation5], %s301
        %p303 = pneg %p85
        %p304 = pneg %p82
        %s305 = sand.u32 %s24, 1
        %s306 = scalar_lea.sflag [#allocation6], %s305
        %s307 = sand.u32 %s98, 1
        %s308 = smul.addr %s307, 2048
        %s309 = scalar_lea.vmem [#allocation7], %s308
        %p310 = pneg %p111
        %p311 = pneg %p108
        %p312 = scmp.lt.s32.totalorder %s28, 2
        %s313 = scalar_select %p312, %s28, 2
        %s314 = smul.addr %s313, 2
        %s315 = smul.addr %s314, 8
        %s316 = scalar_lea.vmem %s3, %s315
        %p317 = pneg %p137
        %p318 = pneg %p134
        %p319 = pneg %p165
        %p320 = pneg %p162
        %s321 = sand.u32 %s152, 1
        %s322 = scalar_lea.sflag [#allocation4], %s321
        %s323 = sand.u32 %s152, 1
        %s324 = smul.addr %s323, 128
        %s325 = scalar_lea.vmem [#allocation8], %s324
        %p326 = scmp.lt.s32.totalorder %s28, 2
        %s327 = scalar_select %p326, %s28, 2
        %s328 = smul.addr %s327, 2
        %s329 = smul.addr %s328, 8
        %s330 = scalar_lea.vmem %s3, %s329
        %v331 = vld [vmem:[%s268] sm:$0xff]
        %v332 = vld [vmem:[%s268 + $0x8] sm:$0xff]
        %v333 = vld [vmem:[%s268 + $0x10] sm:$0xff]
        %v334 = vld [vmem:[%s268 + $0x18] sm:$0xff]
        %v335 = vld [vmem:[%s268 + $0x20] sm:$0xff]
        %v336 = vld [vmem:[%s268 + $0x28] sm:$0xff]
        %v337 = vld [vmem:[%s268 + $0x30] sm:$0xff]
        %v338 = vld [vmem:[%s268 + $0x38] sm:$0xff]
        %v339 = vld [vmem:[%s277] sm:$0xff]
        %v340 = vld [vmem:[%s277 + $0x8] sm:$0xff]
        %v341 = vld [vmem:[%s286] sm:$0xff]
        %v342 = vld [vmem:[%s286 + $0x8] sm:$0xff]
        %v343 = vld [vmem:[%s286 + $0x10] sm:$0xff]
        %v344 = vld [vmem:[%s286 + $0x18] sm:$0xff]
        %v345 = vld [vmem:[%s286 + $0x20] sm:$0xff]
        %v346 = vld [vmem:[%s286 + $0x28] sm:$0xff]
        %v347 = vld [vmem:[%s286 + $0x30] sm:$0xff]
        %v348 = vld [vmem:[%s286 + $0x38] sm:$0xff]
        %v349 = vld [vmem:[%s286 + $0x40] sm:$0xff]
        %v350 = vld [vmem:[%s286 + $0x48] sm:$0xff]
        %v351 = vld [vmem:[%s286 + $0x50] sm:$0xff]
        %v352 = vld [vmem:[%s286 + $0x58] sm:$0xff]
        %v353 = vld [vmem:[%s286 + $0x60] sm:$0xff]
        %v354 = vld [vmem:[%s286 + $0x68] sm:$0xff]
        %v355 = vld [vmem:[%s286 + $0x70] sm:$0xff]
        %v356 = vld [vmem:[%s286 + $0x78] sm:$0xff]
        %v357 = vld [vmem:[%s286 + $0x80] sm:$0xff]
        %v358 = vld [vmem:[%s286 + $0x88] sm:$0xff]
        %v359 = vld [vmem:[%s286 + $0x90] sm:$0xff]
        %v360 = vld [vmem:[%s286 + $0x98] sm:$0xff]
        %v361 = vld [vmem:[%s286 + $0xa0] sm:$0xff]
        %v362 = vld [vmem:[%s286 + $0xa8] sm:$0xff]
        %v363 = vld [vmem:[%s286 + $0xb0] sm:$0xff]
        %v364 = vld [vmem:[%s286 + $0xb8] sm:$0xff]
        %v365 = vld [vmem:[%s286 + $0xc0] sm:$0xff]
        %v366 = vld [vmem:[%s286 + $0xc8] sm:$0xff]
        %v367 = vld [vmem:[%s286 + $0xd0] sm:$0xff]
        %v368 = vld [vmem:[%s286 + $0xd8] sm:$0xff]
        %v369 = vld [vmem:[%s286 + $0xe0] sm:$0xff]
        %v370 = vld [vmem:[%s286 + $0xe8] sm:$0xff]
        %v371 = vld [vmem:[%s286 + $0xf0] sm:$0xff]
        %v372 = vld [vmem:[%s286 + $0xf8] sm:$0xff]
        %v373 = vld [vmem:[%s286 + $0x100] sm:$0xff]
        %v374 = vld [vmem:[%s286 + $0x108] sm:$0xff]
        %v375 = vld [vmem:[%s286 + $0x110] sm:$0xff]
        %v376 = vld [vmem:[%s286 + $0x118] sm:$0xff]
        %v377 = vld [vmem:[%s286 + $0x120] sm:$0xff]
        %v378 = vld [vmem:[%s286 + $0x128] sm:$0xff]
        %v379 = vld [vmem:[%s286 + $0x130] sm:$0xff]
        %v380 = vld [vmem:[%s286 + $0x138] sm:$0xff]
        %v381 = vld [vmem:[%s286 + $0x140] sm:$0xff]
        %v382 = vld [vmem:[%s286 + $0x148] sm:$0xff]
        %v383 = vld [vmem:[%s286 + $0x150] sm:$0xff]
        %v384 = vld [vmem:[%s286 + $0x158] sm:$0xff]
        %v385 = vld [vmem:[%s286 + $0x160] sm:$0xff]
        %v386 = vld [vmem:[%s286 + $0x168] sm:$0xff]
        %v387 = vld [vmem:[%s286 + $0x170] sm:$0xff]
        %v388 = vld [vmem:[%s286 + $0x178] sm:$0xff]
        %v389 = vld [vmem:[%s286 + $0x180] sm:$0xff]
        %v390 = vld [vmem:[%s286 + $0x188] sm:$0xff]
        %v391 = vld [vmem:[%s286 + $0x190] sm:$0xff]
        %v392 = vld [vmem:[%s286 + $0x198] sm:$0xff]
        %v393 = vld [vmem:[%s286 + $0x1a0] sm:$0xff]
        %v394 = vld [vmem:[%s286 + $0x1a8] sm:$0xff]
        %v395 = vld [vmem:[%s286 + $0x1b0] sm:$0xff]
        %v396 = vld [vmem:[%s286 + $0x1b8] sm:$0xff]
        %v397 = vld [vmem:[%s286 + $0x1c0] sm:$0xff]
        %v398 = vld [vmem:[%s286 + $0x1c8] sm:$0xff]
        %v399 = vld [vmem:[%s286 + $0x1d0] sm:$0xff]
        %v400 = vld [vmem:[%s286 + $0x1d8] sm:$0xff]
        %v401 = vld [vmem:[%s286 + $0x1e0] sm:$0xff]
        %v402 = vld [vmem:[%s286 + $0x1e8] sm:$0xff]
        %v403 = vld [vmem:[%s286 + $0x1f0] sm:$0xff]
        %v404 = vld [vmem:[%s286 + $0x1f8] sm:$0xff]
        %v405 = vld [vmem:[%s286 + $0x200] sm:$0xff]
        %v406 = vld [vmem:[%s286 + $0x208] sm:$0xff]
        %v407 = vld [vmem:[%s286 + $0x210] sm:$0xff]
        %v408 = vld [vmem:[%s286 + $0x218] sm:$0xff]
        %v409 = vld [vmem:[%s286 + $0x220] sm:$0xff]
        %v410 = vld [vmem:[%s286 + $0x228] sm:$0xff]
        %v411 = vld [vmem:[%s286 + $0x230] sm:$0xff]
        %v412 = vld [vmem:[%s286 + $0x238] sm:$0xff]
        %v413 = vld [vmem:[%s286 + $0x240] sm:$0xff]
        %v414 = vld [vmem:[%s286 + $0x248] sm:$0xff]
        %v415 = vld [vmem:[%s286 + $0x250] sm:$0xff]
        %v416 = vld [vmem:[%s286 + $0x258] sm:$0xff]
        %v417 = vld [vmem:[%s286 + $0x260] sm:$0xff]
        %v418 = vld [vmem:[%s286 + $0x268] sm:$0xff]
        %v419 = vld [vmem:[%s286 + $0x270] sm:$0xff]
        %v420 = vld [vmem:[%s286 + $0x278] sm:$0xff]
        %v421 = vld [vmem:[%s286 + $0x280] sm:$0xff]
        %v422 = vld [vmem:[%s286 + $0x288] sm:$0xff]
        %v423 = vld [vmem:[%s286 + $0x290] sm:$0xff]
        %v424 = vld [vmem:[%s286 + $0x298] sm:$0xff]
        %v425 = vld [vmem:[%s286 + $0x2a0] sm:$0xff]
        %v426 = vld [vmem:[%s286 + $0x2a8] sm:$0xff]
        %v427 = vld [vmem:[%s286 + $0x2b0] sm:$0xff]
        %v428 = vld [vmem:[%s286 + $0x2b8] sm:$0xff]
        %v429 = vld [vmem:[%s286 + $0x2c0] sm:$0xff]
        %v430 = vld [vmem:[%s286 + $0x2c8] sm:$0xff]
        %v431 = vld [vmem:[%s286 + $0x2d0] sm:$0xff]
        %v432 = vld [vmem:[%s286 + $0x2d8] sm:$0xff]
        %v433 = vld [vmem:[%s286 + $0x2e0] sm:$0xff]
        %v434 = vld [vmem:[%s286 + $0x2e8] sm:$0xff]
        %v435 = vld [vmem:[%s286 + $0x2f0] sm:$0xff]
        %v436 = vld [vmem:[%s286 + $0x2f8] sm:$0xff]
        %v437 = vld [vmem:[%s286 + $0x300] sm:$0xff]
        %v438 = vld [vmem:[%s286 + $0x308] sm:$0xff]
        %v439 = vld [vmem:[%s286 + $0x310] sm:$0xff]
        %v440 = vld [vmem:[%s286 + $0x318] sm:$0xff]
        %v441 = vld [vmem:[%s286 + $0x320] sm:$0xff]
        %v442 = vld [vmem:[%s286 + $0x328] sm:$0xff]
        %v443 = vld [vmem:[%s286 + $0x330] sm:$0xff]
        %v444 = vld [vmem:[%s286 + $0x338] sm:$0xff]
        %v445 = vld [vmem:[%s286 + $0x340] sm:$0xff]
        %v446 = vld [vmem:[%s286 + $0x348] sm:$0xff]
        %v447 = vld [vmem:[%s286 + $0x350] sm:$0xff]
        %v448 = vld [vmem:[%s286 + $0x358] sm:$0xff]
        %v449 = vld [vmem:[%s286 + $0x360] sm:$0xff]
        %v450 = vld [vmem:[%s286 + $0x368] sm:$0xff]
        %v451 = vld [vmem:[%s286 + $0x370] sm:$0xff]
        %v452 = vld [vmem:[%s286 + $0x378] sm:$0xff]
        %v453 = vld [vmem:[%s286 + $0x380] sm:$0xff]
        %v454 = vld [vmem:[%s286 + $0x388] sm:$0xff]
        %v455 = vld [vmem:[%s286 + $0x390] sm:$0xff]
        %v456 = vld [vmem:[%s286 + $0x398] sm:$0xff]
        %v457 = vld [vmem:[%s286 + $0x3a0] sm:$0xff]
        %v458 = vld [vmem:[%s286 + $0x3a8] sm:$0xff]
        %v459 = vld [vmem:[%s286 + $0x3b0] sm:$0xff]
        %v460 = vld [vmem:[%s286 + $0x3b8] sm:$0xff]
        %v461 = vld [vmem:[%s286 + $0x3c0] sm:$0xff]
        %v462 = vld [vmem:[%s286 + $0x3c8] sm:$0xff]
        %v463 = vld [vmem:[%s286 + $0x3d0] sm:$0xff]
        %v464 = vld [vmem:[%s286 + $0x3d8] sm:$0xff]
        %v465 = vld [vmem:[%s286 + $0x3e0] sm:$0xff]
        %v466 = vld [vmem:[%s286 + $0x3e8] sm:$0xff]
        %v467 = vld [vmem:[%s286 + $0x3f0] sm:$0xff]
        %v468 = vld [vmem:[%s286 + $0x3f8] sm:$0xff]
        %v469 = vld [vmem:[%s286 + $0x400] sm:$0xff]
        %v470 = vld [vmem:[%s286 + $0x408] sm:$0xff]
        %v471 = vld [vmem:[%s286 + $0x410] sm:$0xff]
        %v472 = vld [vmem:[%s286 + $0x418] sm:$0xff]
        %v473 = vld [vmem:[%s286 + $0x420] sm:$0xff]
        %v474 = vld [vmem:[%s286 + $0x428] sm:$0xff]
        %v475 = vld [vmem:[%s286 + $0x430] sm:$0xff]
        %v476 = vld [vmem:[%s286 + $0x438] sm:$0xff]
        %v477 = vld [vmem:[%s286 + $0x440] sm:$0xff]
        %v478 = vld [vmem:[%s286 + $0x448] sm:$0xff]
        %v479 = vld [vmem:[%s286 + $0x450] sm:$0xff]
        %v480 = vld [vmem:[%s286 + $0x458] sm:$0xff]
        %v481 = vld [vmem:[%s286 + $0x460] sm:$0xff]
        %v482 = vld [vmem:[%s286 + $0x468] sm:$0xff]
        %v483 = vld [vmem:[%s286 + $0x470] sm:$0xff]
        %v484 = vld [vmem:[%s286 + $0x478] sm:$0xff]
        %v485 = vld [vmem:[%s286 + $0x480] sm:$0xff]
        %v486 = vld [vmem:[%s286 + $0x488] sm:$0xff]
        %v487 = vld [vmem:[%s286 + $0x490] sm:$0xff]
        %v488 = vld [vmem:[%s286 + $0x498] sm:$0xff]
        %v489 = vld [vmem:[%s286 + $0x4a0] sm:$0xff]
        %v490 = vld [vmem:[%s286 + $0x4a8] sm:$0xff]
        %v491 = vld [vmem:[%s286 + $0x4b0] sm:$0xff]
        %v492 = vld [vmem:[%s286 + $0x4b8] sm:$0xff]
        %v493 = vld [vmem:[%s286 + $0x4c0] sm:$0xff]
        %v494 = vld [vmem:[%s286 + $0x4c8] sm:$0xff]
        %v495 = vld [vmem:[%s286 + $0x4d0] sm:$0xff]
        %v496 = vld [vmem:[%s286 + $0x4d8] sm:$0xff]
        %v497 = vld [vmem:[%s286 + $0x4e0] sm:$0xff]
        %v498 = vld [vmem:[%s286 + $0x4e8] sm:$0xff]
        %v499 = vld [vmem:[%s286 + $0x4f0] sm:$0xff]
        %v500 = vld [vmem:[%s286 + $0x4f8] sm:$0xff]
        %v501 = vld [vmem:[%s286 + $0x500] sm:$0xff]
        %v502 = vld [vmem:[%s286 + $0x508] sm:$0xff]
        %v503 = vld [vmem:[%s286 + $0x510] sm:$0xff]
        %v504 = vld [vmem:[%s286 + $0x518] sm:$0xff]
        %v505 = vld [vmem:[%s286 + $0x520] sm:$0xff]
        %v506 = vld [vmem:[%s286 + $0x528] sm:$0xff]
        %v507 = vld [vmem:[%s286 + $0x530] sm:$0xff]
        %v508 = vld [vmem:[%s286 + $0x538] sm:$0xff]
        %v509 = vld [vmem:[%s286 + $0x540] sm:$0xff]
        %v510 = vld [vmem:[%s286 + $0x548] sm:$0xff]
        %v511 = vld [vmem:[%s286 + $0x550] sm:$0xff]
        %v512 = vld [vmem:[%s286 + $0x558] sm:$0xff]
        %v513 = vld [vmem:[%s286 + $0x560] sm:$0xff]
        %v514 = vld [vmem:[%s286 + $0x568] sm:$0xff]
        %v515 = vld [vmem:[%s286 + $0x570] sm:$0xff]
        %v516 = vld [vmem:[%s286 + $0x578] sm:$0xff]
        %v517 = vld [vmem:[%s286 + $0x580] sm:$0xff]
        %v518 = vld [vmem:[%s286 + $0x588] sm:$0xff]
        %v519 = vld [vmem:[%s286 + $0x590] sm:$0xff]
        %v520 = vld [vmem:[%s286 + $0x598] sm:$0xff]
        %v521 = vld [vmem:[%s286 + $0x5a0] sm:$0xff]
        %v522 = vld [vmem:[%s286 + $0x5a8] sm:$0xff]
        %v523 = vld [vmem:[%s286 + $0x5b0] sm:$0xff]
        %v524 = vld [vmem:[%s286 + $0x5b8] sm:$0xff]
        %v525 = vld [vmem:[%s286 + $0x5c0] sm:$0xff]
        %v526 = vld [vmem:[%s286 + $0x5c8] sm:$0xff]
        %v527 = vld [vmem:[%s286 + $0x5d0] sm:$0xff]
        %v528 = vld [vmem:[%s286 + $0x5d8] sm:$0xff]
        %v529 = vld [vmem:[%s286 + $0x5e0] sm:$0xff]
        %v530 = vld [vmem:[%s286 + $0x5e8] sm:$0xff]
        %v531 = vld [vmem:[%s286 + $0x5f0] sm:$0xff]
        %v532 = vld [vmem:[%s286 + $0x5f8] sm:$0xff]
        %v533 = vld [vmem:[%s286 + $0x600] sm:$0xff]
        %v534 = vld [vmem:[%s286 + $0x608] sm:$0xff]
        %v535 = vld [vmem:[%s286 + $0x610] sm:$0xff]
        %v536 = vld [vmem:[%s286 + $0x618] sm:$0xff]
        %v537 = vld [vmem:[%s286 + $0x620] sm:$0xff]
        %v538 = vld [vmem:[%s286 + $0x628] sm:$0xff]
        %v539 = vld [vmem:[%s286 + $0x630] sm:$0xff]
        %v540 = vld [vmem:[%s286 + $0x638] sm:$0xff]
        %v541 = vld [vmem:[%s286 + $0x640] sm:$0xff]
        %v542 = vld [vmem:[%s286 + $0x648] sm:$0xff]
        %v543 = vld [vmem:[%s286 + $0x650] sm:$0xff]
        %v544 = vld [vmem:[%s286 + $0x658] sm:$0xff]
        %v545 = vld [vmem:[%s286 + $0x660] sm:$0xff]
        %v546 = vld [vmem:[%s286 + $0x668] sm:$0xff]
        %v547 = vld [vmem:[%s286 + $0x670] sm:$0xff]
        %v548 = vld [vmem:[%s286 + $0x678] sm:$0xff]
        %v549 = vld [vmem:[%s286 + $0x680] sm:$0xff]
        %v550 = vld [vmem:[%s286 + $0x688] sm:$0xff]
        %v551 = vld [vmem:[%s286 + $0x690] sm:$0xff]
        %v552 = vld [vmem:[%s286 + $0x698] sm:$0xff]
        %v553 = vld [vmem:[%s286 + $0x6a0] sm:$0xff]
        %v554 = vld [vmem:[%s286 + $0x6a8] sm:$0xff]
        %v555 = vld [vmem:[%s286 + $0x6b0] sm:$0xff]
        %v556 = vld [vmem:[%s286 + $0x6b8] sm:$0xff]
        %v557 = vld [vmem:[%s286 + $0x6c0] sm:$0xff]
        %v558 = vld [vmem:[%s286 + $0x6c8] sm:$0xff]
        %v559 = vld [vmem:[%s286 + $0x6d0] sm:$0xff]
        %v560 = vld [vmem:[%s286 + $0x6d8] sm:$0xff]
        %v561 = vld [vmem:[%s286 + $0x6e0] sm:$0xff]
        %v562 = vld [vmem:[%s286 + $0x6e8] sm:$0xff]
        %v563 = vld [vmem:[%s286 + $0x6f0] sm:$0xff]
        %v564 = vld [vmem:[%s286 + $0x6f8] sm:$0xff]
        %v565 = vld [vmem:[%s286 + $0x700] sm:$0xff]
        %v566 = vld [vmem:[%s286 + $0x708] sm:$0xff]
        %v567 = vld [vmem:[%s286 + $0x710] sm:$0xff]
        %v568 = vld [vmem:[%s286 + $0x718] sm:$0xff]
        %v569 = vld [vmem:[%s286 + $0x720] sm:$0xff]
        %v570 = vld [vmem:[%s286 + $0x728] sm:$0xff]
        %v571 = vld [vmem:[%s286 + $0x730] sm:$0xff]
        %v572 = vld [vmem:[%s286 + $0x738] sm:$0xff]
        %v573 = vld [vmem:[%s286 + $0x740] sm:$0xff]
        %v574 = vld [vmem:[%s286 + $0x748] sm:$0xff]
        %v575 = vld [vmem:[%s286 + $0x750] sm:$0xff]
        %v576 = vld [vmem:[%s286 + $0x758] sm:$0xff]
        %v577 = vld [vmem:[%s286 + $0x760] sm:$0xff]
        %v578 = vld [vmem:[%s286 + $0x768] sm:$0xff]
        %v579 = vld [vmem:[%s286 + $0x770] sm:$0xff]
        %v580 = vld [vmem:[%s286 + $0x778] sm:$0xff]
        %v581 = vld [vmem:[%s286 + $0x780] sm:$0xff]
        %v582 = vld [vmem:[%s286 + $0x788] sm:$0xff]
        %v583 = vld [vmem:[%s286 + $0x790] sm:$0xff]
        %v584 = vld [vmem:[%s286 + $0x798] sm:$0xff]
        %v585 = vld [vmem:[%s286 + $0x7a0] sm:$0xff]
        %v586 = vld [vmem:[%s286 + $0x7a8] sm:$0xff]
        %v587 = vld [vmem:[%s286 + $0x7b0] sm:$0xff]
        %v588 = vld [vmem:[%s286 + $0x7b8] sm:$0xff]
        %v589 = vld [vmem:[%s286 + $0x7c0] sm:$0xff]
        %v590 = vld [vmem:[%s286 + $0x7c8] sm:$0xff]
        %v591 = vld [vmem:[%s286 + $0x7d0] sm:$0xff]
        %v592 = vld [vmem:[%s286 + $0x7d8] sm:$0xff]
        %v593 = vld [vmem:[%s286 + $0x7e0] sm:$0xff]
        %v594 = vld [vmem:[%s286 + $0x7e8] sm:$0xff]
        %v595 = vld [vmem:[%s286 + $0x7f0] sm:$0xff]
        %v596 = vld [vmem:[%s286 + $0x7f8] sm:$0xff]
        %vm597 = vcmask 261120
        %v599 = vsel %vm597, %v339, 0
        %v602 = vsel %vm597, %v340, 0
        %604 = vmatprep.subr.mxu0 %v332
        %605 = vmatpush1.msra.mxu0 %v331
        %606 = vmatprep.subr.mxu0 %v334
        %607 = vmatpush1.msra.mxu0 %v333
        %608 = vmatprep.subr.mxu0 %v336
        %609 = vmatpush1.msra.mxu0 %v335
        %610 = vmatprep.subr.mxu0 %v338
        %611 = vmatpush1.msra.mxu0 %v337
        %612 = vmatprep.subr.mxu0 0.0
        %613 = vmatpush1.msra.mxu0 0.0
        %614 = vmatprep.subr.mxu0 0.0
        %615 = vmatpush1.msra.mxu0 0.0
        %616 = vmatprep.subr.mxu0 0.0
        %617 = vmatpush1.msra.mxu0 0.0
        %618 = vmatprep.subr.mxu0 0.0
        %619 = vmatpush1.msra.mxu0 0.0
        %620 = vmatprep.subr.mxu0 0.0
        %621 = vmatpush1.msra.mxu0 0.0
        %622 = vmatprep.subr.mxu0 0.0
        %623 = vmatpush1.msra.mxu0 0.0
        %624 = vmatprep.subr.mxu0 0.0
        %625 = vmatpush1.msra.mxu0 0.0
        %626 = vmatprep.subr.mxu0 0.0
        %627 = vmatpush1.msra.mxu0 0.0
        %628 = vmatprep.subr.mxu0 0.0
        %629 = vmatpush1.msra.mxu0 0.0
        %630 = vmatprep.subr.mxu0 0.0
        %631 = vmatpush1.msra.mxu0 0.0
        %632 = vmatprep.subr.mxu0 0.0
        %633 = vmatpush1.msra.mxu0 0.0
        %634 = vmatprep.subr.mxu0 0.0
        %635 = vmatpush1.msra.mxu0 0.0
        %636 = vmatprep.subr.mxu0 0.0
        %637 = vmatpush1.msra.mxu0 0.0
        %638 = vmatprep.subr.mxu0 0.0
        %639 = vmatpush1.msra.mxu0 0.0
        %640 = vmatprep.subr.mxu0 0.0
        %641 = vmatpush1.msra.mxu0 0.0
        %642 = vmatprep.subr.mxu0 0.0
        %643 = vmatpush1.msra.mxu0 0.0
        %644 = vmatprep.subr.mxu0 0.0
        %645 = vmatpush1.msra.mxu0 0.0
        %646 = vmatprep.subr.mxu0 0.0
        %647 = vmatpush1.msra.mxu0 0.0
        %648 = vmatprep.subr.mxu0 0.0
        %649 = vmatpush1.msra.mxu0 0.0
        %650 = vmatprep.subr.mxu0 0.0
        %651 = vmatpush1.msra.mxu0 0.0
        %652 = vmatprep.subr.mxu0 0.0
        %653 = vmatpush1.msra.mxu0 0.0
        %654 = vmatprep.subr.mxu0 0.0
        %655 = vmatpush1.msra.mxu0 0.0
        %656 = vmatprep.subr.mxu0 0.0
        %657 = vmatpush1.msra.mxu0 0.0
        %658 = vmatprep.subr.mxu0 0.0
        %659 = vmatpush1.msra.mxu0 0.0
        %660 = vmatprep.subr.mxu0 0.0
        %661 = vmatpush1.msra.mxu0 0.0
        %662 = vmatprep.subr.mxu0 0.0
        %663 = vmatpush1.msra.mxu0 0.0
        %664 = vmatprep.subr.mxu0 0.0
        %665 = vmatpush1.msra.mxu0 0.0
        %666 = vmatprep.subr.mxu0 0.0
        %667 = vmatpush1.msra.mxu0 0.0
        %668 = vmatprep.mubr.f32.mxu0 0.0
        %669 = vmatmul.mubr.f32.gmra.mrb[0].mxu0 %v599
        %v670 = vpop.f32.mrb[0].mxu0
        %v671 = vadd.f32 0.0, %v670
        %v672 = vpop.f32.mrb[0].mxu0
        %v673 = vadd.f32 0.0, %v672
        %674 = vmatprep.mubr.f32.mxu0 0.0
        %675 = vmatmul.mubr.f32.gmra.mrb[0].mxu0 %v602
        %v676 = vpop.f32.mrb[0].mxu0
        %v677 = vadd.f32 0.0, %v676
        %v678 = vpop.f32.mrb[0].mxu0
        %v679 = vadd.f32 0.0, %v678
        %680 = vdwg.mxu0
        %v681 = vld [vmem:[%s330] sm:$0xff]
        %v682 = vld [vmem:[%s330 + $0x8] sm:$0xff]
        %684 = vset.pattern.permute.xlu0 0
        %685 = vperm.xlu0 %684, %v681
        %v686 = vpop.permute.xlu0 %685
        %689 = vset.pattern.permute.xlu0 0
        %690 = vperm.xlu0 %689, %v682
        %v691 = vpop.permute.xlu0 %690
        %693 = vmatprep.subr.mxu0 %v342
        %694 = vmatpush1.msra.mxu0 %v341
        %695 = vmatprep.subr.mxu0 %v350
        %696 = vmatpush1.msra.mxu0 %v349
        %697 = vmatprep.subr.mxu0 %v358
        %698 = vmatpush1.msra.mxu0 %v357
        %699 = vmatprep.subr.mxu0 %v366
        %700 = vmatpush1.msra.mxu0 %v365
        %701 = vmatprep.subr.mxu0 %v374
        %702 = vmatpush1.msra.mxu0 %v373
        %703 = vmatprep.subr.mxu0 %v382
        %704 = vmatpush1.msra.mxu0 %v381
        %705 = vmatprep.subr.mxu0 %v390
        %706 = vmatpush1.msra.mxu0 %v389
        %707 = vmatprep.subr.mxu0 %v398
        %708 = vmatpush1.msra.mxu0 %v397
        %709 = vmatprep.subr.mxu0 %v406
        %710 = vmatpush1.msra.mxu0 %v405
        %711 = vmatprep.subr.mxu0 %v414
        %712 = vmatpush1.msra.mxu0 %v413
        %713 = vmatprep.subr.mxu0 %v422
        %714 = vmatpush1.msra.mxu0 %v421
        %715 = vmatprep.subr.mxu0 %v430
        %716 = vmatpush1.msra.mxu0 %v429
        %717 = vmatprep.subr.mxu0 %v438
        %718 = vmatpush1.msra.mxu0 %v437
        %719 = vmatprep.subr.mxu0 %v446
        %720 = vmatpush1.msra.mxu0 %v445
        %721 = vmatprep.subr.mxu0 %v454
        %722 = vmatpush1.msra.mxu0 %v453
        %723 = vmatprep.subr.mxu0 %v462
        %724 = vmatpush1.msra.mxu0 %v461
        %725 = vmatprep.subr.mxu0 %v470
        %726 = vmatpush1.msra.mxu0 %v469
        %727 = vmatprep.subr.mxu0 %v478
        %728 = vmatpush1.msra.mxu0 %v477
        %729 = vmatprep.subr.mxu0 %v486
        %730 = vmatpush1.msra.mxu0 %v485
        %731 = vmatprep.subr.mxu0 %v494
        %732 = vmatpush1.msra.mxu0 %v493
        %733 = vmatprep.subr.mxu0 %v502
        %734 = vmatpush1.msra.mxu0 %v501
        %735 = vmatprep.subr.mxu0 %v510
        %736 = vmatpush1.msra.mxu0 %v509
        %737 = vmatprep.subr.mxu0 %v518
        %738 = vmatpush1.msra.mxu0 %v517
        %739 = vmatprep.subr.mxu0 %v526
        %740 = vmatpush1.msra.mxu0 %v525
        %741 = vmatprep.subr.mxu0 %v534
        %742 = vmatpush1.msra.mxu0 %v533
        %743 = vmatprep.subr.mxu0 %v542
        %744 = vmatpush1.msra.mxu0 %v541
        %745 = vmatprep.subr.mxu0 %v550
        %746 = vmatpush1.msra.mxu0 %v549
        %747 = vmatprep.subr.mxu0 %v558
        %748 = vmatpush1.msra.mxu0 %v557
        %749 = vmatprep.subr.mxu0 %v566
        %750 = vmatpush1.msra.mxu0 %v565
        %751 = vmatprep.subr.mxu0 %v574
        %752 = vmatpush1.msra.mxu0 %v573
        %753 = vmatprep.subr.mxu0 %v582
        %754 = vmatpush1.msra.mxu0 %v581
        %755 = vmatprep.subr.mxu0 %v590
        %756 = vmatpush1.msra.mxu0 %v589
        %757 = vmatprep.mubr.f32.mxu0 %v673
        %758 = vmatmul.mubr.f32.gmra.mrb[0].mxu0 %v671
        %v759 = vpop.f32.mrb[0].mxu0
        %v760 = vadd.f32 %v686, %v759
        %v761 = vpop.f32.mrb[0].mxu0
        %v762 = vadd.f32 %v686, %v761
        %763 = vmatprep.mubr.f32.mxu0 %v679
        %764 = vmatmul.mubr.f32.gmra.mrb[0].mxu0 %v677
        %v765 = vpop.f32.mrb[0].mxu0
        %v766 = vadd.f32 %v691, %v765
        %v767 = vpop.f32.mrb[0].mxu0
        %v768 = vadd.f32 %v691, %v767
        %769 = vdwg.mxu0
        %770 = vmatprep.subr.mxu0 %v344
        %771 = vmatpush1.msra.mxu0 %v343
        %772 = vmatprep.subr.mxu0 %v352
        %773 = vmatpush1.msra.mxu0 %v351
        %774 = vmatprep.subr.mxu0 %v360
        %775 = vmatpush1.msra.mxu0 %v359
        %776 = vmatprep.subr.mxu0 %v368
        %777 = vmatpush1.msra.mxu0 %v367
        %778 = vmatprep.subr.mxu0 %v376
        %779 = vmatpush1.msra.mxu0 %v375
        %780 = vmatprep.subr.mxu0 %v384
        %781 = vmatpush1.msra.mxu0 %v383
        %782 = vmatprep.subr.mxu0 %v392
        %783 = vmatpush1.msra.mxu0 %v391
        %784 = vmatprep.subr.mxu0 %v400
        %785 = vmatpush1.msra.mxu0 %v399
        %786 = vmatprep.subr.mxu0 %v408
        %787 = vmatpush1.msra.mxu0 %v407
        %788 = vmatprep.subr.mxu0 %v416
        %789 = vmatpush1.msra.mxu0 %v415
        %790 = vmatprep.subr.mxu0 %v424
        %791 = vmatpush1.msra.mxu0 %v423
        %792 = vmatprep.subr.mxu0 %v432
        %793 = vmatpush1.msra.mxu0 %v431
        %794 = vmatprep.subr.mxu0 %v440
        %795 = vmatpush1.msra.mxu0 %v439
        %796 = vmatprep.subr.mxu0 %v448
        %797 = vmatpush1.msra.mxu0 %v447
        %798 = vmatprep.subr.mxu0 %v456
        %799 = vmatpush1.msra.mxu0 %v455
        %800 = vmatprep.subr.mxu0 %v464
        %801 = vmatpush1.msra.mxu0 %v463
        %802 = vmatprep.subr.mxu0 %v472
        %803 = vmatpush1.msra.mxu0 %v471
        %804 = vmatprep.subr.mxu0 %v480
        %805 = vmatpush1.msra.mxu0 %v479
        %806 = vmatprep.subr.mxu0 %v488
        %807 = vmatpush1.msra.mxu0 %v487
        %808 = vmatprep.subr.mxu0 %v496
        %809 = vmatpush1.msra.mxu0 %v495
        %810 = vmatprep.subr.mxu0 %v504
        %811 = vmatpush1.msra.mxu0 %v503
        %812 = vmatprep.subr.mxu0 %v512
        %813 = vmatpush1.msra.mxu0 %v511
        %814 = vmatprep.subr.mxu0 %v520
        %815 = vmatpush1.msra.mxu0 %v519
        %816 = vmatprep.subr.mxu0 %v528
        %817 = vmatpush1.msra.mxu0 %v527
        %818 = vmatprep.subr.mxu0 %v536
        %819 = vmatpush1.msra.mxu0 %v535
        %820 = vmatprep.subr.mxu0 %v544
        %821 = vmatpush1.msra.mxu0 %v543
        %822 = vmatprep.subr.mxu0 %v552
        %823 = vmatpush1.msra.mxu0 %v551
        %824 = vmatprep.subr.mxu0 %v560
        %825 = vmatpush1.msra.mxu0 %v559
        %826 = vmatprep.subr.mxu0 %v568
        %827 = vmatpush1.msra.mxu0 %v567
        %828 = vmatprep.subr.mxu0 %v576
        %829 = vmatpush1.msra.mxu0 %v575
        %830 = vmatprep.subr.mxu0 %v584
        %831 = vmatpush1.msra.mxu0 %v583
        %832 = vmatprep.subr.mxu0 %v592
        %833 = vmatpush1.msra.mxu0 %v591
        %834 = vmatprep.mubr.f32.mxu0 %v673
        %835 = vmatmul.mubr.f32.gmra.mrb[0].mxu0 %v671
        %v836 = vpop.f32.mrb[0].mxu0
        %v837 = vadd.f32 %v686, %v836
        %v838 = vpop.f32.mrb[0].mxu0
        %v839 = vadd.f32 %v686, %v838
        %840 = vmatprep.mubr.f32.mxu0 %v679
        %841 = vmatmul.mubr.f32.gmra.mrb[0].mxu0 %v677
        %v842 = vpop.f32.mrb[0].mxu0
        %v843 = vadd.f32 %v691, %v842
        %v844 = vpop.f32.mrb[0].mxu0
        %v845 = vadd.f32 %v691, %v844
        %846 = vdwg.mxu0
        %847 = vmatprep.subr.mxu0 %v346
        %848 = vmatpush1.msra.mxu0 %v345
        %849 = vmatprep.subr.mxu0 %v354
        %850 = vmatpush1.msra.mxu0 %v353
        %851 = vmatprep.subr.mxu0 %v362
        %852 = vmatpush1.msra.mxu0 %v361
        %853 = vmatprep.subr.mxu0 %v370
        %854 = vmatpush1.msra.mxu0 %v369
        %855 = vmatprep.subr.mxu0 %v378
        %856 = vmatpush1.msra.mxu0 %v377
        %857 = vmatprep.subr.mxu0 %v386
        %858 = vmatpush1.msra.mxu0 %v385
        %859 = vmatprep.subr.mxu0 %v394
        %860 = vmatpush1.msra.mxu0 %v393
        %861 = vmatprep.subr.mxu0 %v402
        %862 = vmatpush1.msra.mxu0 %v401
        %863 = vmatprep.subr.mxu0 %v410
        %864 = vmatpush1.msra.mxu0 %v409
        %865 = vmatprep.subr.mxu0 %v418
        %866 = vmatpush1.msra.mxu0 %v417
        %867 = vmatprep.subr.mxu0 %v426
        %868 = vmatpush1.msra.mxu0 %v425
        %869 = vmatprep.subr.mxu0 %v434
        %870 = vmatpush1.msra.mxu0 %v433
        %871 = vmatprep.subr.mxu0 %v442
        %872 = vmatpush1.msra.mxu0 %v441
        %873 = vmatprep.subr.mxu0 %v450
        %874 = vmatpush1.msra.mxu0 %v449
        %875 = vmatprep.subr.mxu0 %v458
        %876 = vmatpush1.msra.mxu0 %v457
        %877 = vmatprep.subr.mxu0 %v466
        %878 = vmatpush1.msra.mxu0 %v465
        %879 = vmatprep.subr.mxu0 %v474
        %880 = vmatpush1.msra.mxu0 %v473
        %881 = vmatprep.subr.mxu0 %v482
        %882 = vmatpush1.msra.mxu0 %v481
        %883 = vmatprep.subr.mxu0 %v490
        %884 = vmatpush1.msra.mxu0 %v489
        %885 = vmatprep.subr.mxu0 %v498
        %886 = vmatpush1.msra.mxu0 %v497
        %887 = vmatprep.subr.mxu0 %v506
        %888 = vmatpush1.msra.mxu0 %v505
        %889 = vmatprep.subr.mxu0 %v514
        %890 = vmatpush1.msra.mxu0 %v513
        %891 = vmatprep.subr.mxu0 %v522
        %892 = vmatpush1.msra.mxu0 %v521
        %893 = vmatprep.subr.mxu0 %v530
        %894 = vmatpush1.msra.mxu0 %v529
        %895 = vmatprep.subr.mxu0 %v538
        %896 = vmatpush1.msra.mxu0 %v537
        %897 = vmatprep.subr.mxu0 %v546
        %898 = vmatpush1.msra.mxu0 %v545
        %899 = vmatprep.subr.mxu0 %v554
        %900 = vmatpush1.msra.mxu0 %v553
        %901 = vmatprep.subr.mxu0 %v562
        %902 = vmatpush1.msra.mxu0 %v561
        %903 = vmatprep.subr.mxu0 %v570
        %904 = vmatpush1.msra.mxu0 %v569
        %905 = vmatprep.subr.mxu0 %v578
        %906 = vmatpush1.msra.mxu0 %v577
        %907 = vmatprep.subr.mxu0 %v586
        %908 = vmatpush1.msra.mxu0 %v585
        %909 = vmatprep.subr.mxu0 %v594
        %910 = vmatpush1.msra.mxu0 %v593
        %911 = vmatprep.mubr.f32.mxu0 %v673
        %912 = vmatmul.mubr.f32.gmra.mrb[0].mxu0 %v671
        %v913 = vpop.f32.mrb[0].mxu0
        %v914 = vadd.f32 %v686, %v913
        %v915 = vpop.f32.mrb[0].mxu0
        %v916 = vadd.f32 %v686, %v915
        %917 = vmatprep.mubr.f32.mxu0 %v679
        %918 = vmatmul.mubr.f32.gmra.mrb[0].mxu0 %v677
        %v919 = vpop.f32.mrb[0].mxu0
        %v920 = vadd.f32 %v691, %v919
        %v921 = vpop.f32.mrb[0].mxu0
        %v922 = vadd.f32 %v691, %v921
        %923 = vdwg.mxu0
        %924 = vmatprep.subr.mxu0 %v348
        %925 = vmatpush1.msra.mxu0 %v347
        %926 = vmatprep.subr.mxu0 %v356
        %927 = vmatpush1.msra.mxu0 %v355
        %928 = vmatprep.subr.mxu0 %v364
        %929 = vmatpush1.msra.mxu0 %v363
        %930 = vmatprep.subr.mxu0 %v372
        %931 = vmatpush1.msra.mxu0 %v371
        %932 = vmatprep.subr.mxu0 %v380
        %933 = vmatpush1.msra.mxu0 %v379
        %934 = vmatprep.subr.mxu0 %v388
        %935 = vmatpush1.msra.mxu0 %v387
        %936 = vmatprep.subr.mxu0 %v396
        %937 = vmatpush1.msra.mxu0 %v395
        %938 = vmatprep.subr.mxu0 %v404
        %939 = vmatpush1.msra.mxu0 %v403
        %940 = vmatprep.subr.mxu0 %v412
        %941 = vmatpush1.msra.mxu0 %v411
        %942 = vmatprep.subr.mxu0 %v420
        %943 = vmatpush1.msra.mxu0 %v419
        %944 = vmatprep.subr.mxu0 %v428
        %945 = vmatpush1.msra.mxu0 %v427
        %946 = vmatprep.subr.mxu0 %v436
        %947 = vmatpush1.msra.mxu0 %v435
        %948 = vmatprep.subr.mxu0 %v444
        %949 = vmatpush1.msra.mxu0 %v443
        %950 = vmatprep.subr.mxu0 %v452
        %951 = vmatpush1.msra.mxu0 %v451
        %952 = vmatprep.subr.mxu0 %v460
        %953 = vmatpush1.msra.mxu0 %v459
        %954 = vmatprep.subr.mxu0 %v468
        %955 = vmatpush1.msra.mxu0 %v467
        %956 = vmatprep.subr.mxu0 %v476
        %957 = vmatpush1.msra.mxu0 %v475
        %958 = vmatprep.subr.mxu0 %v484
        %959 = vmatpush1.msra.mxu0 %v483
        %960 = vmatprep.subr.mxu0 %v492
        %961 = vmatpush1.msra.mxu0 %v491
        %962 = vmatprep.subr.mxu0 %v500
        %963 = vmatpush1.msra.mxu0 %v499
        %964 = vmatprep.subr.mxu0 %v508
        %965 = vmatpush1.msra.mxu0 %v507
        %966 = vmatprep.subr.mxu0 %v516
        %967 = vmatpush1.msra.mxu0 %v515
        %968 = vmatprep.subr.mxu0 %v524
        %969 = vmatpush1.msra.mxu0 %v523
        %970 = vmatprep.subr.mxu0 %v532
        %971 = vmatpush1.msra.mxu0 %v531
        %972 = vmatprep.subr.mxu0 %v540
        %973 = vmatpush1.msra.mxu0 %v539
        %974 = vmatprep.subr.mxu0 %v548
        %975 = vmatpush1.msra.mxu0 %v547
        %976 = vmatprep.subr.mxu0 %v556
        %977 = vmatpush1.msra.mxu0 %v555
        %978 = vmatprep.subr.mxu0 %v564
        %979 = vmatpush1.msra.mxu0 %v563
        %980 = vmatprep.subr.mxu0 %v572
        %981 = vmatpush1.msra.mxu0 %v571
        %982 = vmatprep.subr.mxu0 %v580
        %983 = vmatpush1.msra.mxu0 %v579
        %984 = vmatprep.subr.mxu0 %v588
        %985 = vmatpush1.msra.mxu0 %v587
        %986 = vmatprep.subr.mxu0 %v596
        %987 = vmatpush1.msra.mxu0 %v595
        %988 = vmatprep.mubr.f32.mxu0 %v673
        %989 = vmatmul.mubr.f32.gmra.mrb[0].mxu0 %v671
        %v990 = vpop.f32.mrb[0].mxu0
        %v991 = vadd.f32 %v686, %v990
        %v992 = vpop.f32.mrb[0].mxu0
        %v993 = vadd.f32 %v686, %v992
        %994 = vmatprep.mubr.f32.mxu0 %v679
        %995 = vmatmul.mubr.f32.gmra.mrb[0].mxu0 %v677
        %v996 = vpop.f32.mrb[0].mxu0
        %v997 = vadd.f32 %v691, %v996
        %v998 = vpop.f32.mrb[0].mxu0
        %v999 = vadd.f32 %v691, %v998
        %1000 = vdwg.mxu0
        %1001 = vst [vmem:[%s325] sm:$0xff] %v760
        %1002 = vst [vmem:[%s325 + $0x8] sm:$0xff] %v762
        %1003 = vst [vmem:[%s325 + $0x10] sm:$0xff] %v837
        %1004 = vst [vmem:[%s325 + $0x18] sm:$0xff] %v839
        %1005 = vst [vmem:[%s325 + $0x20] sm:$0xff] %v914
        %1006 = vst [vmem:[%s325 + $0x28] sm:$0xff] %v916
        %1007 = vst [vmem:[%s325 + $0x30] sm:$0xff] %v991
        %1008 = vst [vmem:[%s325 + $0x38] sm:$0xff] %v993
        %1009 = vst [vmem:[%s325 + $0x40] sm:$0xff] %v766
        %1010 = vst [vmem:[%s325 + $0x48] sm:$0xff] %v768
        %1011 = vst [vmem:[%s325 + $0x50] sm:$0xff] %v843
        %1012 = vst [vmem:[%s325 + $0x58] sm:$0xff] %v845
        %1013 = vst [vmem:[%s325 + $0x60] sm:$0xff] %v920
        %1014 = vst [vmem:[%s325 + $0x68] sm:$0xff] %v922
        %1015 = vst [vmem:[%s325 + $0x70] sm:$0xff] %v997
        %1016 = vst [vmem:[%s325 + $0x78] sm:$0xff] %v999
        %s1017 = sand.u32 %s152, 1
        %s1018 = scalar_lea.sflag [#allocation4], %s1017
        %s1019 = sand.u32 %s152, 1
        %s1020 = smul.addr %s1019, 128
        %s1021 = scalar_lea.vmem [#allocation8], %s1020
        // Predicated region
        $region49: #{tpu_custom_call.1} parent=35 // pred_check
          %p1022 = pneg %p162
        $region50: #{tpu_custom_call.1} parent=35 // pred_check_branch
          %1024 = sbr.rel (%p1022) target = $region52
        $region51: #{tpu_custom_call.1} parent=35 // pred_region
          %s1026 = ssub.s32 2048, 2048
          %1027 = vsyncadd %s1018, %s1026
          %s1028 = smul.addr %s29, 16
          %s1029 = smul.addr %s28, 32
          %s1030 = sadd.s32 %s1028, %s1029
          %s1031 = smul.addr %s1030, 128
          %s1032 = scalar_lea.hbm %s4, %s1031
          %s1033 = sshll.u32 %s1021, 4
          %s1034 = int_to_ptr.vmem [resolvable:$true] %s1033
          %1039 = dma.vmem_to_hbm [thread:$0]  %s1034, 2048, %s1032, %s1018, 1024, 1024, 64
        $region52: #{tpu_custom_call.1} parent=35 // pred_fallthru
          _
      $region36: #{tpu_custom_call.1} parent=5 // pred_fallthru
        _
      %p1040 = scmp.le.s32.totalorder 2, %s19
      // Predicated region
      $region53: #{tpu_custom_call.1} parent=5 // pred_check
        %p1041 = pneg %p1040
      $region54: #{tpu_custom_call.1} parent=5 // pred_check_branch
        %1043 = sbr.rel (%p1041) target = $region56
      $region55: #{tpu_custom_call.1} parent=5 // pred_region
        %s1044 = ssub.s32 %s19, 2
        // Predicated region
        $region57: #{tpu_custom_call.1} parent=55 // pred_check
          %p1045 = pneg %p168
        $region58: #{tpu_custom_call.1} parent=55 // pred_check_branch
          %1047 = sbr.rel (%p1045) target = $region60
        $region59: #{tpu_custom_call.1} parent=55 // pred_region
          %s1048 = sand.u32 %s153, 1
          %s1049 = scalar_lea.sflag [#allocation4], %s1048
          %s1050 = sand.u32 %s153, 1
          %s1051 = smul.addr %s1050, 128
          %s1052 = scalar_lea.vmem [#allocation8], %s1051
          %1053 = dma.done %s1049, 2048
        $region60: #{tpu_custom_call.1} parent=55 // pred_fallthru
          _
      $region56: #{tpu_custom_call.1} parent=5 // pred_fallthru
        _
    $region6: #{tpu_custom_call.1} parent=1 // loop_footer
      %s23 = sadd.s32 1, %s19
    $region7: #{tpu_custom_call.1} parent=1 // loop_footer_branch
      %18 = sbr.rel target = $region3
    $region8: #{tpu_custom_call.1} parent=1 // loop_exit
      _
    %1054 = vsyncpa [#allocation3], 1
    %s1055 = scalar_lea.sflag [#allocation3], 1
    %1056 = vsyncpa %s1055, 1
    %1057 = vsyncpa [#allocation6], 1
    %s1058 = scalar_lea.sflag [#allocation6], 1
    %1059 = vsyncpa %s1058, 1
    %1060 = vsyncpa [#allocation4], 1
    %s1061 = scalar_lea.sflag [#allocation4], 1
    %1062 = vsyncpa %s1061, 1

</llo_original>
